<compile_context>
chip_gen: v6e
topology: v6e:2x2x1
jax: 0.10.0
libtpu: 0.0.40
codegen_flags: <defaults>
</compile_context>

<pallas_src>
import jax
import jax.numpy as jnp
from jax.experimental import pallas as pl
from jax.experimental.pallas import tpu as pltpu

_NEG_BIG = -1e30   # finite "-inf" for padded logit columns (avoids inf-inf edge cases)
_C_PAD = 128       # lane-dense class padding for the fc2 matmul / softmax reduce


def classnet_kernel(x_ref, w1_ref, b1_ref, w2_ref, b2_ref, out_ref):
    # In-kernel f32 -> bf16 cast of the x tile (VPU cast is free under the
    # memory-bound slack; avoids a separate XLA convert pass over x in HBM).
    x = x_ref[...].astype(w1_ref.dtype)

    # fc1 + ReLU: bf16 operands, f32 accumulation on the MXU; activations kept f32.
    h = jnp.dot(x, w1_ref[...], preferred_element_type=jnp.float32)
    h = jnp.maximum(h + b1_ref[...], 0.0)

    # x.view(-1, hidden_size) is a no-op: h is already (tb, hidden).

    # fc2 against lane-padded (hidden, 128) weights; padded columns carry a -1e30
    # bias so they contribute exp(~-inf) == 0 to the softmax denominator.
    logits = jnp.dot(h.astype(w2_ref.dtype), w2_ref[...],
                     preferred_element_type=jnp.float32) + b2_ref[...]

    # Numerically stable log_softmax over the 128-lane (padded) class axis.
    m = jnp.max(logits, axis=-1, keepdims=True)
    shifted = logits - m
    lse = jnp.log(jnp.sum(jnp.exp(shifted), axis=-1, keepdims=True))
    logp = shifted - lse

    # Store only the real class columns (narrow masked store; tiny write bytes,
    # removes the post-kernel slicing pass entirely).
    out_ref[...] = logp[:, :out_ref.shape[-1]].astype(out_ref.dtype)


def classnet_forward(x, w1, b1, w2, b2, *, block_b=512, compute_dtype=jnp.bfloat16):
    """x: (B, in) f32, w1: (in, hidden), b1: (1, hidden), w2: (hidden, C), b2: (1, C)."""
    B, in_features = x.shape
    hidden = w1.shape[1]
    n_classes = w2.shape[1]

    # --- lane-dense padding of the tiny class dim (compute side only): C -> 128 ----
    w2p = jnp.zeros((hidden, _C_PAD), w2.dtype).at[:, :n_classes].set(w2)
    b2p = jnp.full((1, _C_PAD), _NEG_BIG, jnp.float32).at[:, :n_classes].set(
        b2.astype(jnp.float32))

    # --- batch tiling ---------------------------------------------------------------
    # Large tile (amortize per-step overhead), rounded to a multiple of 16 (bf16 packs
    # two rows per sublane). No padding copy: Pallas clips the edge block; garbage edge
    # rows are row-local through log_softmax and never written back to HBM.
    tb = max(16, min(block_b, ((B + 15) // 16) * 16))
    tb = ((tb + 15) // 16) * 16
    grid = (pl.cdiv(B, tb),)

    # Weights cast once in the wrapper (they are reused across all grid steps and kept
    # VMEM-resident via constant index_maps); x is cast inside the kernel.
    w1c = w1.astype(compute_dtype)
    w2c = w2p.astype(compute_dtype)
    b1f = b1.astype(jnp.float32)

    return pl.pallas_call(
        classnet_kernel,
        out_shape=jax.ShapeDtypeStruct((B, n_classes), jnp.float32),
        grid=grid,
        in_specs=[
            pl.BlockSpec((tb, in_features), lambda i: (i, 0)),       # x: batch-tiled f32
            pl.BlockSpec((in_features, hidden), lambda i: (0, 0)),   # w1: VMEM-resident
            pl.BlockSpec((1, hidden), lambda i: (0, 0)),             # b1
            pl.BlockSpec((hidden, _C_PAD), lambda i: (0, 0)),        # w2 (lane-padded)
            pl.BlockSpec((1, _C_PAD), lambda i: (0, 0)),             # b2 (lane-padded)
        ],
        out_specs=pl.BlockSpec((tb, n_classes), lambda i: (i, 0)),   # narrow (B, 2) out
        compiler_params=pltpu.CompilerParams(
            dimension_semantics=("parallel",)),
    )(x, w1c, b1f, w2c, b2p)


def reference_forward(x, w1, b1, w2, b2, compute_dtype=jnp.bfloat16):
    # Same bf16-operand / f32-accumulation recipe, pure XLA.
    xc = x.astype(compute_dtype)
    h = jnp.dot(xc, w1.astype(compute_dtype),
                preferred_element_type=jnp.float32) + b1
    h = jnp.maximum(h, 0.0)
    logits = jnp.dot(h.astype(compute_dtype), w2.astype(compute_dtype),
                     preferred_element_type=jnp.float32) + b2
    return jax.nn.log_softmax(logits, axis=1)


if __name__ == "__main__":
    # Small shapes consistent with the module: Linear(in, hidden) -> Linear(hidden, 2).
    # batch=24 with block_b=16 exercises a 2-step parallel grid with a partial
    # (clipped) edge block.
    batch, input_size, hidden_size, n_classes = 24, 128, 256, 2

    key = jax.random.PRNGKey(0)
    kx, kw1, kb1, kw2, kb2 = jax.random.split(key, 5)

    # Deterministic parameter init (uniform, roughly matching nn.Linear's scale)
    s1 = 1.0 / jnp.sqrt(input_size)
    s2 = 1.0 / jnp.sqrt(hidden_size)
    x = jax.random.normal(kx, (batch, input_size), dtype=jnp.float32)
    w1 = jax.random.uniform(kw1, (input_size, hidden_size), jnp.float32, -s1, s1)
    b1 = jax.random.uniform(kb1, (1, hidden_size), jnp.float32, -s1, s1)
    w2 = jax.random.uniform(kw2, (hidden_size, n_classes), jnp.float32, -s2, s2)
    b2 = jax.random.uniform(kb2, (1, n_classes), jnp.float32, -s2, s2)

    out = classnet_forward(x, w1, b1, w2, b2, block_b=16)
    jax.block_until_ready(out)

    ref = reference_forward(x, w1, b1, w2, b2)
    assert out.shape == (batch, n_classes)
    assert jnp.allclose(out, ref, atol=2e-3, rtol=2e-3), "mismatch vs reference"

    print("KERNEL_OK")
</pallas_src>

<mosaic_0001>
module attributes {stable_mosaic.version = 11 : i64} {
  func.func @classnet_kernel(%arg0: i32, %arg1: memref<16x128xf32, #tpu.memory_space<vmem>>, %arg2: memref<128x256xbf16, #tpu.memory_space<vmem>>, %arg3: memref<1x256xf32, #tpu.memory_space<vmem>>, %arg4: memref<256x128xbf16, #tpu.memory_space<vmem>>, %arg5: memref<1x128xf32, #tpu.memory_space<vmem>>, %arg6: memref<16x2xf32, #tpu.memory_space<vmem>>) attributes {dimension_semantics = [#tpu.dimension_semantics<parallel>], iteration_bounds = array<i64: 2>, scalar_prefetch = 0 : i64, scratch_operands = 0 : i64, tpu.core_type = #tpu.core_type<tc>, window_params = [{transform_indices = @transform_0, window_bounds = array<i64: 16, 128>}, {pipeline_mode = #tpu.pipeline_mode<synchronous>, transform_indices = @transform_1, window_bounds = array<i64: 128, 256>}, {pipeline_mode = #tpu.pipeline_mode<synchronous>, transform_indices = @transform_2, window_bounds = array<i64: 1, 256>}, {pipeline_mode = #tpu.pipeline_mode<synchronous>, transform_indices = @transform_3, window_bounds = array<i64: 256, 128>}, {pipeline_mode = #tpu.pipeline_mode<synchronous>, transform_indices = @transform_4, window_bounds = array<i64: 1, 128>}, {transform_indices = @transform_5, window_bounds = array<i64: 16, 2>}]} {
    %c0 = arith.constant 0 : index
    %c0_0 = arith.constant 0 : index
    %0 = vector.load %arg1[%c0, %c0_0] : memref<16x128xf32, #tpu.memory_space<vmem>>, vector<16x128xf32>
    %1 = arith.truncf %0 : vector<16x128xf32> to vector<16x128xbf16>
    %c0_1 = arith.constant 0 : index
    %c0_2 = arith.constant 0 : index
    %2 = vector.load %arg2[%c0_1, %c0_2] : memref<128x256xbf16, #tpu.memory_space<vmem>>, vector<128x256xbf16>
    %cst = arith.constant dense<0.000000e+00> : vector<16x256xf32>
    %3 = tpu.matmul %1, %2, %cst {dimension_numbers = #tpu.dot_dimension_numbers<[1], [0], [0], [1], [0, 0, 1, 1], [], []>} : vector<16x128xbf16>, vector<128x256xbf16>, vector<16x256xf32> -> vector<16x256xf32>
    %c0_3 = arith.constant 0 : index
    %c0_4 = arith.constant 0 : index
    %4 = vector.load %arg3[%c0_3, %c0_4] : memref<1x256xf32, #tpu.memory_space<vmem>>, vector<1x256xf32>
    %5 = vector.broadcast %4 : vector<1x256xf32> to vector<16x256xf32>
    %6 = arith.addf %3, %5 : vector<16x256xf32>
    %cst_5 = arith.constant 0.000000e+00 : f32
    %7 = vector.broadcast %cst_5 : f32 to vector<16x256xf32>
    %8 = arith.maximumf %6, %7 : vector<16x256xf32>
    %9 = arith.truncf %8 : vector<16x256xf32> to vector<16x256xbf16>
    %c0_6 = arith.constant 0 : index
    %c0_7 = arith.constant 0 : index
    %10 = vector.load %arg4[%c0_6, %c0_7] : memref<256x128xbf16, #tpu.memory_space<vmem>>, vector<256x128xbf16>
    %cst_8 = arith.constant dense<0.000000e+00> : vector<16x128xf32>
    %11 = tpu.matmul %9, %10, %cst_8 {dimension_numbers = #tpu.dot_dimension_numbers<[1], [0], [0], [1], [0, 0, 1, 1], [], []>} : vector<16x256xbf16>, vector<256x128xbf16>, vector<16x128xf32> -> vector<16x128xf32>
    %c0_9 = arith.constant 0 : index
    %c0_10 = arith.constant 0 : index
    %12 = vector.load %arg5[%c0_9, %c0_10] : memref<1x128xf32, #tpu.memory_space<vmem>>, vector<1x128xf32>
    %13 = vector.broadcast %12 : vector<1x128xf32> to vector<16x128xf32>
    %14 = arith.addf %11, %13 : vector<16x128xf32>
    %cst_11 = arith.constant dense<0xFF800000> : vector<16xf32>
    %15 = vector.multi_reduction <maximumf>, %14, %cst_11 [1] : vector<16x128xf32> to vector<16xf32>
    %16 = vector.shape_cast %15 : vector<16xf32> to vector<16x1xf32>
    %17 = vector.broadcast %16 : vector<16x1xf32> to vector<16x128xf32>
    %18 = arith.subf %14, %17 : vector<16x128xf32>
    %19 = math.exp %18 : vector<16x128xf32>
    %cst_12 = arith.constant dense<0.000000e+00> : vector<16xf32>
    %20 = vector.multi_reduction <add>, %19, %cst_12 [1] : vector<16x128xf32> to vector<16xf32>
    %21 = vector.shape_cast %20 : vector<16xf32> to vector<16x1xf32>
    %22 = math.log %21 : vector<16x1xf32>
    %23 = vector.broadcast %22 : vector<16x1xf32> to vector<16x128xf32>
    %24 = arith.subf %18, %23 : vector<16x128xf32>
    %25 = vector.extract_strided_slice %24 {offsets = [0, 0], sizes = [16, 2], strides = [1, 1]} : vector<16x128xf32> to vector<16x2xf32>
    %c0_13 = arith.constant 0 : index
    %c0_14 = arith.constant 0 : index
    %26 = vector.load %arg6[%c0_13, %c0_14] : memref<16x2xf32, #tpu.memory_space<vmem>>, vector<16x2xf32>
    tpu.vector_store %arg6[%c0_13, %c0_14], %25 {strides = array<i32>} : memref<16x2xf32, #tpu.memory_space<vmem>>, vector<16x2xf32>,
    return
  }
  func.func @transform_0(%arg0: i32) -> (i32, i32) {
    %c0_i32 = arith.constant 0 : i32
    %c0_i32_0 = arith.constant 0 : i32
    return %arg0, %c0_i32 : i32, i32
  }
  func.func @transform_1(%arg0: i32) -> (i32, i32) {
    %c0_i32 = arith.constant 0 : i32
    %c0_i32_0 = arith.constant 0 : i32
    %c0_i32_1 = arith.constant 0 : i32
    return %c0_i32, %c0_i32_0 : i32, i32
  }
  func.func @transform_2(%arg0: i32) -> (i32, i32) {
    %c0_i32 = arith.constant 0 : i32
    %c0_i32_0 = arith.constant 0 : i32
    %c0_i32_1 = arith.constant 0 : i32
    return %c0_i32, %c0_i32_0 : i32, i32
  }
  func.func @transform_3(%arg0: i32) -> (i32, i32) {
    %c0_i32 = arith.constant 0 : i32
    %c0_i32_0 = arith.constant 0 : i32
    %c0_i32_1 = arith.constant 0 : i32
    return %c0_i32, %c0_i32_0 : i32, i32
  }
  func.func @transform_4(%arg0: i32) -> (i32, i32) {
    %c0_i32 = arith.constant 0 : i32
    %c0_i32_0 = arith.constant 0 : i32
    %c0_i32_1 = arith.constant 0 : i32
    return %c0_i32, %c0_i32_0 : i32, i32
  }
  func.func @transform_5(%arg0: i32) -> (i32, i32) {
    %c0_i32 = arith.constant 0 : i32
    %c0_i32_0 = arith.constant 0 : i32
    return %arg0, %c0_i32 : i32, i32
  }
}

</mosaic_0001>

<llo_original>
// kernel: tpu_custom_call.1
$region0: #{tpu_custom_call.1}
  #allocation0 [shape = 'u32[]', space=smem, size = 0x4, offset = 0x4, fixed_abs, tag = 'smem constant byte address 0x4 - core index']
  #allocation1 [shape = 'u32[144,128]{1,0:T(1,128)}', space=vmem, size = 0x12000, scoped, tag = 'internal scratch']
  %s0 = inlined_call_operand.hbm [shape: f32[24,128], index: 0, kind: input, shape index: {}]
  %s1 = inlined_call_operand.hbm [shape: bf16[128,256], index: 1, kind: input, shape index: {}]
  %s2 = inlined_call_operand.vmem [shape: f32[1,256], index: 2, kind: input, shape index: {}]
  %s3 = inlined_call_operand.hbm [shape: bf16[256,128], index: 3, kind: input, shape index: {}]
  %s4 = inlined_call_operand.vmem [shape: f32[1,128], index: 4, kind: input, shape index: {}]
  %s5 = inlined_call_operand.vmem [shape: f32[24,2], index: 5, kind: output, shape index: {}]
  %s6 = sld [smem:[#allocation0]]
  $region113: #{tpu_custom_call.1} parent=0
    _
  %s8 = ssub.s32 1, %s6
  %s9 = scalar_select 0, %s8, %s6
  $region1: #{tpu_custom_call.1} parent=0
    #allocation2 [shape = 'u8[16384]{0}', space=vmem, size = 0x4000, scoped, tag = 'input window, operand 0']
    #allocation3 [shape = 's32[2]{0}', space=sflag, size = 0x8, scoped, tag = 'scoped memory for tpu_custom_call.1']
    #allocation4 [shape = 'u8[65536]{0}', space=vmem, size = 0x10000, scoped, tag = 'input window, operand 1, single buffered']
    #allocation5 [shape = 's32[1]{0}', space=sflag, size = 0x4, scoped, tag = 'scoped memory for tpu_custom_call.1']
    #allocation6 [shape = 'u8[65536]{0}', space=vmem, size = 0x10000, scoped, tag = 'input window, operand 3, single buffered']
    #allocation7 [shape = 'u8[16384]{0}', space=vmem, size = 0x4000, scoped, tag = 'output window, operand 0']
    %10 = vsyncpa [#allocation3], 0
    %s11 = scalar_lea.sflag [#allocation3], 1
    %12 = vsyncpa %s11, 0
    %13 = vsyncpa [#allocation5], 0
    loop: start=0, step=1, limit=4
    $region2: #{tpu_custom_call.1} parent=1 // loop_pre_header
      _
    $region3: #{tpu_custom_call.1} parent=1 // loop_header
      %s15 = sphi 0, %s19
      %p16 = scmp.ge.s32.totalorder %s15, 4
      %s25 = sphi 0, %s27
      %s28 = sphi 0, %s25
      %s29 = sphi 0, %s28
      %s45 = sphi 0, %s29
      %s49 = sphi 0, %s49
      %s51 = sphi 0, %s49
      %s52 = sphi 0, %s51
      %s66 = sphi 0, %s52
      %s70 = sphi 0, %s70
      %s72 = sphi 0, %s70
      %s73 = sphi 0, %s72
      %s87 = sphi 0, %s73
      %s91 = sphi 0, %s91
      %s93 = sphi 0, %s91
      %s94 = sphi 0, %s93
      %s108 = sphi 0, %s94
      %s112 = sphi 0, %s112
      %s114 = sphi 0, %s112
      %s115 = sphi 0, %s114
      %s129 = sphi 0, %s115
      %s135 = sphi 0, %s137
      %s138 = sphi 0, %s135
      %s139 = sphi 0, %s138
      %s155 = sphi 0, %s139
    $region4: #{tpu_custom_call.1} parent=1 // loop_header_branch
      %18 = sbr.rel (%p16) target = $region8
    $region5: #{tpu_custom_call.1} parent=1 // loop_body
      %s20 = ssub.s32 %s15, 1
      %s21 = ssub.s32 %s15, 2
      %s22 = sadd.s32 %s15, 1
      %s23 = ssub.s32 %s15, %s22
      %p24 = scmp.eq.s32.totalorder %s23, 0
      %s26 = sadd.s32 %s25, 1
      %s27 = scalar_select %p24, %s25, %s26
      %p30 = pneg %p24
      %p31 = scmp.eq.s32.totalorder %s15, 1
      %p32 = por %p30, %p31
      %p33 = scmp.ne.s32.totalorder %s25, %s28
      %p34 = scmp.eq.s32.totalorder %s15, 0
      %p35 = por %p33, %p34
      %p36 = scmp.ne.s32.totalorder %s25, %s28
      %p37 = scmp.eq.s32.totalorder %s20, 1
      %p38 = por %p36, %p37
      %p39 = scmp.ne.s32.totalorder %s28, %s29
      %p40 = scmp.eq.s32.totalorder %s20, 0
      %p41 = por %p39, %p40
      %p42 = scmp.ne.s32.totalorder %s28, %s29
      %p43 = scmp.eq.s32.totalorder %s21, 1
      %p44 = por %p42, %p43
      %p46 = scmp.ne.s32.totalorder %s29, %s45
      %p47 = scmp.eq.s32.totalorder %s21, 0
      %p48 = por %p46, %p47
      %s50 = sadd.s32 %s49, 1
      %p53 = scmp.eq.s32.totalorder %s15, 1
      %p54 = scmp.ne.s32.totalorder %s49, %s51
      %p55 = scmp.eq.s32.totalorder %s15, 0
      %p56 = por %p54, %p55
      %p57 = scmp.ne.s32.totalorder %s49, %s51
      %p58 = scmp.eq.s32.totalorder %s20, 1
      %p59 = por %p57, %p58
      %p60 = scmp.ne.s32.totalorder %s51, %s52
      %p61 = scmp.eq.s32.totalorder %s20, 0
      %p62 = por %p60, %p61
      %p63 = scmp.ne.s32.totalorder %s51, %s52
      %p64 = scmp.eq.s32.totalorder %s21, 1
      %p65 = por %p63, %p64
      %p67 = scmp.ne.s32.totalorder %s52, %s66
      %p68 = scmp.eq.s32.totalorder %s21, 0
      %p69 = por %p67, %p68
      %s71 = sadd.s32 %s70, 1
      %p74 = scmp.eq.s32.totalorder %s15, 1
      %p75 = scmp.ne.s32.totalorder %s70, %s72
      %p76 = scmp.eq.s32.totalorder %s15, 0
      %p77 = por %p75, %p76
      %p78 = scmp.ne.s32.totalorder %s70, %s72
      %p79 = scmp.eq.s32.totalorder %s20, 1
      %p80 = por %p78, %p79
      %p81 = scmp.ne.s32.totalorder %s72, %s73
      %p82 = scmp.eq.s32.totalorder %s20, 0
      %p83 = por %p81, %p82
      %p84 = scmp.ne.s32.totalorder %s72, %s73
      %p85 = scmp.eq.s32.totalorder %s21, 1
      %p86 = por %p84, %p85
      %p88 = scmp.ne.s32.totalorder %s73, %s87
      %p89 = scmp.eq.s32.totalorder %s21, 0
      %p90 = por %p88, %p89
      %s92 = sadd.s32 %s91, 1
      %p95 = scmp.eq.s32.totalorder %s15, 1
      %p96 = scmp.ne.s32.totalorder %s91, %s93
      %p97 = scmp.eq.s32.totalorder %s15, 0
      %p98 = por %p96, %p97
      %p99 = scmp.ne.s32.totalorder %s91, %s93
      %p100 = scmp.eq.s32.totalorder %s20, 1
      %p101 = por %p99, %p100
      %p102 = scmp.ne.s32.totalorder %s93, %s94
      %p103 = scmp.eq.s32.totalorder %s20, 0
      %p104 = por %p102, %p103
      %p105 = scmp.ne.s32.totalorder %s93, %s94
      %p106 = scmp.eq.s32.totalorder %s21, 1
      %p107 = por %p105, %p106
      %p109 = scmp.ne.s32.totalorder %s94, %s108
      %p110 = scmp.eq.s32.totalorder %s21, 0
      %p111 = por %p109, %p110
      %s113 = sadd.s32 %s112, 1
      %p116 = scmp.eq.s32.totalorder %s15, 1
      %p117 = scmp.ne.s32.totalorder %s112, %s114
      %p118 = scmp.eq.s32.totalorder %s15, 0
      %p119 = por %p117, %p118
      %p120 = scmp.ne.s32.totalorder %s112, %s114
      %p121 = scmp.eq.s32.totalorder %s20, 1
      %p122 = por %p120, %p121
      %p123 = scmp.ne.s32.totalorder %s114, %s115
      %p124 = scmp.eq.s32.totalorder %s20, 0
      %p125 = por %p123, %p124
      %p126 = scmp.ne.s32.totalorder %s114, %s115
      %p127 = scmp.eq.s32.totalorder %s21, 1
      %p128 = por %p126, %p127
      %p130 = scmp.ne.s32.totalorder %s115, %s129
      %p131 = scmp.eq.s32.totalorder %s21, 0
      %p132 = por %p130, %p131
      %s133 = ssub.s32 %s15, %s22
      %p134 = scmp.eq.s32.totalorder %s133, 0
      %s136 = sadd.s32 %s135, 1
      %s137 = scalar_select %p134, %s135, %s136
      %p140 = pneg %p134
      %p141 = scmp.eq.s32.totalorder %s15, 1
      %p142 = por %p140, %p141
      %p143 = scmp.ne.s32.totalorder %s135, %s138
      %p144 = scmp.eq.s32.totalorder %s15, 0
      %p145 = por %p143, %p144
      %p146 = scmp.ne.s32.totalorder %s135, %s138
      %p147 = scmp.eq.s32.totalorder %s20, 1
      %p148 = por %p146, %p147
      %p149 = scmp.ne.s32.totalorder %s138, %s139
      %p150 = scmp.eq.s32.totalorder %s20, 0
      %p151 = por %p149, %p150
      %p152 = scmp.ne.s32.totalorder %s138, %s139
      %p153 = scmp.eq.s32.totalorder %s21, 1
      %p154 = por %p152, %p153
      %p156 = scmp.ne.s32.totalorder %s139, %s155
      %p157 = scmp.eq.s32.totalorder %s21, 0
      %p158 = por %p156, %p157
      %p159 = scmp.le.s32.totalorder 1, %s15
      %p160 = scmp.lt.s32.totalorder %s15, 3
      %p161 = pnand %p159, %p160
      %p162 = pneg %p161
      // Predicated region
      $region9: #{tpu_custom_call.1} parent=5 // pred_check
        _
      $region10: #{tpu_custom_call.1} parent=5 // pred_check_branch
        %164 = sbr.rel (%p161) target = $region12
      $region11: #{tpu_custom_call.1} parent=5 // pred_region
        %s165 = ssub.s32 %s15, 1
        // Predicated region
        $region13: #{tpu_custom_call.1} parent=11 // pred_check
          %p166 = pneg %p62
        $region14: #{tpu_custom_call.1} parent=11 // pred_check_branch
          %168 = sbr.rel (%p166) target = $region16
        $region15: #{tpu_custom_call.1} parent=11 // pred_region
          %s170 = ssub.s32 2048, 2048
          %171 = vsyncadd [#allocation5], %s170
          %s172 = sshll.u32 [#allocation4], 4
          %s173 = int_to_ptr.vmem [resolvable:$true] %s172
          %178 = dma.hbm_to_vmem [thread:$0]  %s1, 2048, %s173, [#allocation5], 128, 128, 8
        $region16: #{tpu_custom_call.1} parent=11 // pred_fallthru
          _
        // Predicated region
        $region17: #{tpu_custom_call.1} parent=11 // pred_check
          %p179 = pneg %p83
        $region18: #{tpu_custom_call.1} parent=11 // pred_check_branch
          %181 = sbr.rel (%p179) target = $region20
        $region19: #{tpu_custom_call.1} parent=11 // pred_region
          _
        $region20: #{tpu_custom_call.1} parent=11 // pred_fallthru
          _
        // Predicated region
        $region21: #{tpu_custom_call.1} parent=11 // pred_check
          %p182 = pneg %p104
        $region22: #{tpu_custom_call.1} parent=11 // pred_check_branch
          %184 = sbr.rel (%p182) target = $region24
        $region23: #{tpu_custom_call.1} parent=11 // pred_region
          %s186 = ssub.s32 2048, 2048
          %187 = vsyncadd [#allocation5], %s186
          %s188 = sshll.u32 [#allocation6], 4
          %s189 = int_to_ptr.vmem [resolvable:$true] %s188
          %194 = dma.hbm_to_vmem [thread:$0]  %s3, 2048, %s189, [#allocation5], 64, 64, 4
        $region24: #{tpu_custom_call.1} parent=11 // pred_fallthru
          _
        // Predicated region
        $region25: #{tpu_custom_call.1} parent=11 // pred_check
          %p195 = pneg %p125
        $region26: #{tpu_custom_call.1} parent=11 // pred_check_branch
          %197 = sbr.rel (%p195) target = $region28
        $region27: #{tpu_custom_call.1} parent=11 // pred_region
          _
        $region28: #{tpu_custom_call.1} parent=11 // pred_fallthru
          _
      $region12: #{tpu_custom_call.1} parent=5 // pred_fallthru
        _
      %p198 = scmp.lt.s32.totalorder %s15, 2
      // Predicated region
      $region29: #{tpu_custom_call.1} parent=5 // pred_check
        %p199 = pneg %p198
      $region30: #{tpu_custom_call.1} parent=5 // pred_check_branch
        %201 = sbr.rel (%p199) target = $region32
      $region31: #{tpu_custom_call.1} parent=5 // pred_region
        // Predicated region
        $region33: #{tpu_custom_call.1} parent=31 // pred_check
          %p202 = pneg %p35
        $region34: #{tpu_custom_call.1} parent=31 // pred_check_branch
          %204 = sbr.rel (%p202) target = $region36
        $region35: #{tpu_custom_call.1} parent=31 // pred_region
          %s205 = sand.u32 %s25, 1
          %s206 = scalar_lea.sflag [#allocation3], %s205
          %s207 = sand.u32 %s25, 1
          %s208 = smul.addr %s207, 16
          %s209 = scalar_lea.vmem [#allocation2], %s208
          %s210 = smul.u32 2, %s15
          %s211 = ssub.s32 3, %s210
          %p212 = scmp.lt.s32.totalorder %s211, 2
          %s213 = scalar_select %p212, %s211, 2
          %s214 = smul.u32 128, %s213
          %s216 = ssub.s32 256, %s214
          %217 = vsyncadd %s206, %s216
          %p218 = scmp.ne.s32.totalorder 0, %s214
          %s219 = smul.addr %s210, 128
          %s220 = scalar_lea.hbm %s0, %s219
          %s221 = smul.u32 8, %s213
          %s222 = sshll.u32 %s209, 4
          %s223 = int_to_ptr.vmem [resolvable:$true] %s222
          %s224 = sshll.u32 %s221, 4
          %228 = dma.hbm_to_vmem [thread:$0]  (%p218), %s220, %s224, %s223, %s206, 128, 128, 8
        $region36: #{tpu_custom_call.1} parent=31 // pred_fallthru
          _
      $region32: #{tpu_custom_call.1} parent=5 // pred_fallthru
        _
      %p229 = scmp.le.s32.totalorder 1, %s15
      %p230 = scmp.lt.s32.totalorder %s15, 3
      %p231 = pnand %p229, %p230
      %p232 = pneg %p231
      // Predicated region
      $region37: #{tpu_custom_call.1} parent=5 // pred_check
        _
      $region38: #{tpu_custom_call.1} parent=5 // pred_check_branch
        %234 = sbr.rel (%p231) target = $region40
      $region39: #{tpu_custom_call.1} parent=5 // pred_region
        %s235 = ssub.s32 %s15, 1
        %s236 = sand.u32 %s28, 1
        %s237 = scalar_lea.sflag [#allocation3], %s236
        %s238 = sand.u32 %s28, 1
        %s239 = smul.addr %s238, 16
        %s240 = scalar_lea.vmem [#allocation2], %s239
        // Predicated region
        $region41: #{tpu_custom_call.1} parent=39 // pred_check
          %p241 = pneg %p41
        $region42: #{tpu_custom_call.1} parent=39 // pred_check_branch
          %243 = sbr.rel (%p241) target = $region44
        $region43: #{tpu_custom_call.1} parent=39 // pred_region
          %244 = dma.done %s237, 256
        $region44: #{tpu_custom_call.1} parent=39 // pred_fallthru
          _
        // Predicated region
        $region45: #{tpu_custom_call.1} parent=39 // pred_check
          %p245 = pneg %p62
        $region46: #{tpu_custom_call.1} parent=39 // pred_check_branch
          %247 = sbr.rel (%p245) target = $region48
        $region47: #{tpu_custom_call.1} parent=39 // pred_region
          %248 = dma.done [#allocation5], 2048
        $region48: #{tpu_custom_call.1} parent=39 // pred_fallthru
          _
        // Predicated region
        $region49: #{tpu_custom_call.1} parent=39 // pred_check
          %p249 = pneg %p104
        $region50: #{tpu_custom_call.1} parent=39 // pred_check_branch
          %251 = sbr.rel (%p249) target = $region52
        $region51: #{tpu_custom_call.1} parent=39 // pred_region
          %252 = dma.done [#allocation5], 2048
        $region52: #{tpu_custom_call.1} parent=39 // pred_fallthru
          _
        %s253 = sand.u32 %s28, 1
        %s254 = scalar_lea.sflag [#allocation3], %s253
        %s255 = sand.u32 %s28, 1
        %s256 = smul.addr %s255, 16
        %s257 = scalar_lea.vmem [#allocation2], %s256
        %p258 = pneg %p41
        %p259 = pneg %p38
        %p260 = pneg %p62
        %p261 = pneg %p59
        %p262 = pneg %p83
        %p263 = pneg %p80
        %p264 = pneg %p104
        %p265 = pneg %p101
        %p266 = pneg %p125
        %p267 = pneg %p122
        %p268 = pneg %p151
        %p269 = pneg %p148
        %s270 = sand.u32 %s138, 1
        %s271 = sand.u32 %s138, 1
        %s272 = smul.addr %s271, 16
        %s273 = scalar_lea.vmem [#allocation7], %s272
        %s274 = smul.u32 2, %s20
        %s275 = ssub.s32 3, %s274
        %p276 = scmp.lt.s32.totalorder %s275, 2
        %s277 = scalar_select %p276, %s275, 2
        %s278 = smul.u32 128, %s277
        %s279 = smul.u32 2, %s20
        %s280 = ssub.s32 3, %s279
        %p281 = scmp.lt.s32.totalorder %s280, 2
        %s282 = scalar_select %p281, %s280, 2
        %s283 = smul.u32 128, %s282
        %v285 = vld [vmem:[%s240] sm:$0xff]
        %v286 = vld [vmem:[%s240 + $0x8] sm:$0xff]
        %v287 = vpack.c.bf16 %v286, %v285
        %v288 = vld [vmem:[#allocation4] sm:$0xff]
        %v289 = vld [vmem:[#allocation4 + $0x8] sm:$0xff]
        %v290 = vld [vmem:[#allocation4 + $0x10] sm:$0xff]
        %v291 = vld [vmem:[#allocation4 + $0x18] sm:$0xff]
        %v292 = vld [vmem:[#allocation4 + $0x20] sm:$0xff]
        %v293 = vld [vmem:[#allocation4 + $0x28] sm:$0xff]
        %v294 = vld [vmem:[#allocation4 + $0x30] sm:$0xff]
        %v295 = vld [vmem:[#allocation4 + $0x38] sm:$0xff]
        %v296 = vld [vmem:[#allocation4 + $0x40] sm:$0xff]
        %v297 = vld [vmem:[#allocation4 + $0x48] sm:$0xff]
        %v298 = vld [vmem:[#allocation4 + $0x50] sm:$0xff]
        %v299 = vld [vmem:[#allocation4 + $0x58] sm:$0xff]
        %v300 = vld [vmem:[#allocation4 + $0x60] sm:$0xff]
        %v301 = vld [vmem:[#allocation4 + $0x68] sm:$0xff]
        %v302 = vld [vmem:[#allocation4 + $0x70] sm:$0xff]
        %v303 = vld [vmem:[#allocation4 + $0x78] sm:$0xff]
        %v304 = vld [vmem:[%s2] sm:$0x3]
        %v306 = vlaneseq
        %v307 = vshrl.u32 %v306, 7
        %v308 = vsub.s32 0, %v307
        %v309 = vrot.slane %v304, %v308
        %v310 = vlaneseq
        %v311 = vshrl.u32 %v310, 7
        %v312 = vsub.s32 1, %v311
        %v313 = vrot.slane %v304, %v312
        %v332 = vunpack.c.l.b16 %v288
        %v333 = vunpack.c.h.b16 %v288
        %v334 = vunpack.c.l.b16 %v289
        %v335 = vunpack.c.h.b16 %v289
        %v336 = vunpack.c.l.b16 %v290
        %v337 = vunpack.c.h.b16 %v290
        %v338 = vunpack.c.l.b16 %v291
        %v339 = vunpack.c.h.b16 %v291
        %v340 = vunpack.c.l.b16 %v292
        %v341 = vunpack.c.h.b16 %v292
        %v342 = vunpack.c.l.b16 %v293
        %v343 = vunpack.c.h.b16 %v293
        %v344 = vunpack.c.l.b16 %v294
        %v345 = vunpack.c.h.b16 %v294
        %v346 = vunpack.c.l.b16 %v295
        %v347 = vunpack.c.h.b16 %v295
        %v348 = vunpack.c.l.b16 %v296
        %v349 = vunpack.c.h.b16 %v296
        %v350 = vunpack.c.l.b16 %v297
        %v351 = vunpack.c.h.b16 %v297
        %v352 = vunpack.c.l.b16 %v298
        %v353 = vunpack.c.h.b16 %v298
        %v354 = vunpack.c.l.b16 %v299
        %v355 = vunpack.c.h.b16 %v299
        %v356 = vunpack.c.l.b16 %v300
        %v357 = vunpack.c.h.b16 %v300
        %v358 = vunpack.c.l.b16 %v301
        %v359 = vunpack.c.h.b16 %v301
        %v360 = vunpack.c.l.b16 %v302
        %v361 = vunpack.c.h.b16 %v302
        %v362 = vunpack.c.l.b16 %v303
        %v363 = vunpack.c.h.b16 %v303
        %v364 = vpack.c.b16 %v334, %v332
        %v365 = vpack.c.b16 %v335, %v333
        %v366 = vpack.c.b16 %v338, %v336
        %v367 = vpack.c.b16 %v339, %v337
        %v368 = vpack.c.b16 %v342, %v340
        %v369 = vpack.c.b16 %v343, %v341
        %v370 = vpack.c.b16 %v346, %v344
        %v371 = vpack.c.b16 %v347, %v345
        %v372 = vpack.c.b16 %v350, %v348
        %v373 = vpack.c.b16 %v351, %v349
        %v374 = vpack.c.b16 %v354, %v352
        %v375 = vpack.c.b16 %v355, %v353
        %v376 = vpack.c.b16 %v358, %v356
        %v377 = vpack.c.b16 %v359, %v357
        %v378 = vpack.c.b16 %v362, %v360
        %v379 = vpack.c.b16 %v363, %v361
        %396 = vmatprep.subr.bf16.mxu0 %v379
        %397 = vmatpush1.bf16.msra.mxu0 %v378
        %398 = vmatprep.subr.bf16.mxu0 %v377
        %399 = vmatpush1.bf16.msra.mxu0 %v376
        %400 = vmatprep.subr.bf16.mxu0 %v375
        %401 = vmatpush1.bf16.msra.mxu0 %v374
        %402 = vmatprep.subr.bf16.mxu0 %v373
        %403 = vmatpush1.bf16.msra.mxu0 %v372
        %404 = vmatprep.subr.bf16.mxu0 %v371
        %405 = vmatpush1.bf16.msra.mxu0 %v370
        %406 = vmatprep.subr.bf16.mxu0 %v369
        %407 = vmatpush1.bf16.msra.mxu0 %v368
        %408 = vmatprep.subr.bf16.mxu0 %v367
        %409 = vmatpush1.bf16.msra.mxu0 %v366
        %410 = vmatprep.subr.bf16.mxu0 %v365
        %411 = vmatpush1.bf16.msra.mxu0 %v364
        %412 = vmatprep.subr.bf16.mxu0 0
        %413 = vmatpush2.bf16.msra.mxu0 0
        %414 = vmatprep.subr.bf16.mxu0 0
        %415 = vmatpush2.bf16.msra.mxu0 0
        %416 = vmatprep.subr.bf16.mxu0 0
        %417 = vmatpush2.bf16.msra.mxu0 0
        %418 = vmatprep.subr.bf16.mxu0 0
        %419 = vmatpush2.bf16.msra.mxu0 0
        %420 = vmatprep.subr.bf16.mxu0 0
        %421 = vmatpush2.bf16.msra.mxu0 0
        %422 = vmatprep.subr.bf16.mxu0 0
        %423 = vmatpush2.bf16.msra.mxu0 0
        %424 = vmatprep.subr.bf16.mxu0 0
        %425 = vmatpush2.bf16.msra.mxu0 0
        %426 = vmatprep.subr.bf16.mxu0 0
        %427 = vmatpush2.bf16.msra.mxu0 0
        %428 = vmatprep.mubr.bf16.mxu0 0
        %429 = vmatmul.mubr.bf16.gmra.mxu0 %v287
        %v430 = vpop.f32.mrf.mxu0
        %v431 = vadd.f32 %v309, %v430
        %v432 = vpop.f32.mrf.mxu0
        %v433 = vadd.f32 %v313, %v432
        %v434 = vpop.f32.mrf.mxu0
        %v435 = vadd.f32 %v309, %v434
        %v436 = vpop.f32.mrf.mxu0
        %v437 = vadd.f32 %v313, %v436
        %438 = vdwg.mxu0
        %v439 = vmax.f32 %v431, 0.0
        %v440 = vmax.f32 %v433, 0.0
        %v441 = vmax.f32 %v435, 0.0
        %v442 = vmax.f32 %v437, 0.0
        %v443 = vpack.c.bf16 %v441, %v439
        %v444 = vpack.c.bf16 %v442, %v440
        %v445 = vld [vmem:[#allocation6] sm:$0xf]
        %v446 = vld [vmem:[#allocation6 + $0x4] sm:$0xf]
        %v447 = vld [vmem:[#allocation6 + $0x8] sm:$0xf]
        %v448 = vld [vmem:[#allocation6 + $0xc] sm:$0xf]
        %v449 = vld [vmem:[#allocation6 + $0x10] sm:$0xf]
        %v450 = vld [vmem:[#allocation6 + $0x14] sm:$0xf]
        %v451 = vld [vmem:[#allocation6 + $0x18] sm:$0xf]
        %v452 = vld [vmem:[#allocation6 + $0x1c] sm:$0xf]
        %v453 = vld [vmem:[#allocation6 + $0x20] sm:$0xf]
        %v454 = vld [vmem:[#allocation6 + $0x24] sm:$0xf]
        %v455 = vld [vmem:[#allocation6 + $0x28] sm:$0xf]
        %v456 = vld [vmem:[#allocation6 + $0x2c] sm:$0xf]
        %v457 = vld [vmem:[#allocation6 + $0x30] sm:$0xf]
        %v458 = vld [vmem:[#allocation6 + $0x34] sm:$0xf]
        %v459 = vld [vmem:[#allocation6 + $0x38] sm:$0xf]
        %v460 = vld [vmem:[#allocation6 + $0x3c] sm:$0xf]
        %v461 = vld [vmem:[#allocation6 + $0x40] sm:$0xf]
        %v462 = vld [vmem:[#allocation6 + $0x44] sm:$0xf]
        %v463 = vld [vmem:[#allocation6 + $0x48] sm:$0xf]
        %v464 = vld [vmem:[#allocation6 + $0x4c] sm:$0xf]
        %v465 = vld [vmem:[#allocation6 + $0x50] sm:$0xf]
        %v466 = vld [vmem:[#allocation6 + $0x54] sm:$0xf]
        %v467 = vld [vmem:[#allocation6 + $0x58] sm:$0xf]
        %v468 = vld [vmem:[#allocation6 + $0x5c] sm:$0xf]
        %v469 = vld [vmem:[#allocation6 + $0x60] sm:$0xf]
        %v470 = vld [vmem:[#allocation6 + $0x64] sm:$0xf]
        %v471 = vld [vmem:[#allocation6 + $0x68] sm:$0xf]
        %v472 = vld [vmem:[#allocation6 + $0x6c] sm:$0xf]
        %v473 = vld [vmem:[#allocation6 + $0x70] sm:$0xf]
        %v474 = vld [vmem:[#allocation6 + $0x74] sm:$0xf]
        %v475 = vld [vmem:[#allocation6 + $0x78] sm:$0xf]
        %v476 = vld [vmem:[#allocation6 + $0x7c] sm:$0xf]
        %v477 = vld [vmem:[%s4] sm:$0x1]
        %v479 = vlaneseq
        %v480 = vshrl.u32 %v479, 7
        %v481 = vsub.s32 0, %v480
        %v482 = vrot.slane %v477, %v481
        %v516 = vunpack.c.l.b16 %v445
        %v517 = vunpack.c.l.b16 %v446
        %v518 = vunpack.c.l.b16 %v447
        %v519 = vunpack.c.l.b16 %v448
        %v520 = vunpack.c.l.b16 %v449
        %v521 = vunpack.c.l.b16 %v450
        %v522 = vunpack.c.l.b16 %v451
        %v523 = vunpack.c.l.b16 %v452
        %v524 = vunpack.c.l.b16 %v453
        %v525 = vunpack.c.l.b16 %v454
        %v526 = vunpack.c.l.b16 %v455
        %v527 = vunpack.c.l.b16 %v456
        %v528 = vunpack.c.l.b16 %v457
        %v529 = vunpack.c.l.b16 %v458
        %v530 = vunpack.c.l.b16 %v459
        %v531 = vunpack.c.l.b16 %v460
        %v532 = vunpack.c.l.b16 %v461
        %v533 = vunpack.c.l.b16 %v462
        %v534 = vunpack.c.l.b16 %v463
        %v535 = vunpack.c.l.b16 %v464
        %v536 = vunpack.c.l.b16 %v465
        %v537 = vunpack.c.l.b16 %v466
        %v538 = vunpack.c.l.b16 %v467
        %v539 = vunpack.c.l.b16 %v468
        %v540 = vunpack.c.l.b16 %v469
        %v541 = vunpack.c.l.b16 %v470
        %v542 = vunpack.c.l.b16 %v471
        %v543 = vunpack.c.l.b16 %v472
        %v544 = vunpack.c.l.b16 %v473
        %v545 = vunpack.c.l.b16 %v474
        %v546 = vunpack.c.l.b16 %v475
        %v547 = vunpack.c.l.b16 %v476
        %v548 = vpack.c.b16 %v517, %v516
        %v549 = vpack.c.b16 %v519, %v518
        %v550 = vpack.c.b16 %v521, %v520
        %v551 = vpack.c.b16 %v523, %v522
        %v552 = vpack.c.b16 %v525, %v524
        %v553 = vpack.c.b16 %v527, %v526
        %v554 = vpack.c.b16 %v529, %v528
        %v555 = vpack.c.b16 %v531, %v530
        %v556 = vpack.c.b16 %v533, %v532
        %v557 = vpack.c.b16 %v535, %v534
        %v558 = vpack.c.b16 %v537, %v536
        %v559 = vpack.c.b16 %v539, %v538
        %v560 = vpack.c.b16 %v541, %v540
        %v561 = vpack.c.b16 %v543, %v542
        %v562 = vpack.c.b16 %v545, %v544
        %v563 = vpack.c.b16 %v547, %v546
        %580 = vmatprep.subr.bf16.mxu0 0
        %581 = vmatpush1.bf16.msra.mxu0 %v555
        %582 = vmatprep.subr.bf16.mxu0 0
        %583 = vmatpush1.bf16.msra.mxu0 %v554
        %584 = vmatprep.subr.bf16.mxu0 0
        %585 = vmatpush1.bf16.msra.mxu0 %v553
        %586 = vmatprep.subr.bf16.mxu0 0
        %587 = vmatpush1.bf16.msra.mxu0 %v552
        %588 = vmatprep.subr.bf16.mxu0 0
        %589 = vmatpush1.bf16.msra.mxu0 %v551
        %590 = vmatprep.subr.bf16.mxu0 0
        %591 = vmatpush1.bf16.msra.mxu0 %v550
        %592 = vmatprep.subr.bf16.mxu0 0
        %593 = vmatpush1.bf16.msra.mxu0 %v549
        %594 = vmatprep.subr.bf16.mxu0 0
        %595 = vmatpush1.bf16.msra.mxu0 %v548
        %596 = vmatprep.subr.bf16.mxu0 0
        %597 = vmatpush2.bf16.msra.mxu0 %v563
        %598 = vmatprep.subr.bf16.mxu0 0
        %599 = vmatpush2.bf16.msra.mxu0 %v562
        %600 = vmatprep.subr.bf16.mxu0 0
        %601 = vmatpush2.bf16.msra.mxu0 %v561
        %602 = vmatprep.subr.bf16.mxu0 0
        %603 = vmatpush2.bf16.msra.mxu0 %v560
        %604 = vmatprep.subr.bf16.mxu0 0
        %605 = vmatpush2.bf16.msra.mxu0 %v559
        %606 = vmatprep.subr.bf16.mxu0 0
        %607 = vmatpush2.bf16.msra.mxu0 %v558
        %608 = vmatprep.subr.bf16.mxu0 0
        %609 = vmatpush2.bf16.msra.mxu0 %v557
        %610 = vmatprep.subr.bf16.mxu0 0
        %611 = vmatpush2.bf16.msra.mxu0 %v556
        %612 = vmatprep.mubr.bf16.mxu0 %v444
        %613 = vmatmul.mubr.bf16.gmra.mxu0 %v443
        %v614 = vpop.f32.mrf.mxu0
        %v615 = vadd.f32 %v482, %v614
        %v616 = vpop.f32.mrf.mxu0
        %v617 = vpop.f32.mrf.mxu0
        %v618 = vadd.f32 %v482, %v617
        %v619 = vpop.f32.mrf.mxu0
        %620 = vdwg.mxu0
        %621 = vmax.xlane.f32.xlu0 %v615
        %v622 = vpop.xlane.xlu0 %621
        %623 = vmax.xlane.f32.xlu0 %v618
        %v624 = vpop.xlane.xlu0 %623
        %v625 = vsub.f32 %v615, %v622
        %v626 = vsub.f32 %v618, %v624
        %v627 = vmul.f32 %v625, 1.442695
        %v628 = vpow.pop %v627
        %v629 = vmul.f32 %v626, 1.442695
        %v630 = vpow.pop %v629
        %631 = vadd.xlane.f32.xlu0 %v628
        %v632 = vpop.xlane.xlu0 %631
        %633 = vadd.xlane.f32.xlu0 %v630
        %v634 = vpop.xlane.xlu0 %633
        %v635 = vlog2.pop %v632
        %v636 = vmul.f32 %v635, 0.6931472
        %v637 = vlog2.pop %v634
        %v638 = vmul.f32 %v637, 0.6931472
        %v639 = vsub.f32 %v625, %v636
        %v640 = vsub.f32 %v626, %v638
        %vm641 = vcmask 15360
        %642 = vst.msk [vmem:[%s273] sm:$0xff] %vm641, %v639
        %643 = vst.msk [vmem:[%s273 + $0x8] sm:$0xff] %vm641, %v640
        %s644 = sand.u32 %s138, 1
        %s645 = sand.u32 %s138, 1
        %s646 = smul.addr %s645, 16
        %s647 = scalar_lea.vmem [#allocation7], %s646
        // Predicated region
        $region53: #{tpu_custom_call.1} parent=39 // pred_check
          %p648 = pneg %p148
        $region54: #{tpu_custom_call.1} parent=39 // pred_check_branch
          %650 = sbr.rel (%p648) target = $region56
        $region55: #{tpu_custom_call.1} parent=39 // pred_region
          %s651 = smul.u32 2, %s20
          %s652 = ssub.s32 3, %s651
          %p653 = scmp.lt.s32.totalorder %s652, 2
          %s654 = scalar_select %p653, %s652, 2
          %s655 = smul.u32 128, %s654
          %p656 = scmp.ne.s32.totalorder 0, %s655
          %s657 = smul.addr %s651, 8
          %s658 = scalar_lea.vmem %s5, %s657
          // Predicated region
          $region57: #{tpu_custom_call.1} parent=55 // pred_check
            %p659 = pneg %p656
          $region58: #{tpu_custom_call.1} parent=55 // pred_check_branch
            %661 = sbr.rel (%p659) target = $region60
          $region59: #{tpu_custom_call.1} parent=55 // pred_region
            // Predicated region
            $region61: #{tpu_custom_call.1} parent=59 // pred_check
              _
            $region62: #{tpu_custom_call.1} parent=59 // pred_check_branch
              %663 = sbr.rel (0) target = $region64
            $region63: #{tpu_custom_call.1} parent=59 // pred_region
              // Predicated region
              $region83: #{tpu_custom_call.1} parent=63 // pred_check
                _
              $region84: #{tpu_custom_call.1} parent=63 // pred_check_branch
                %715 = sbr.rel (0) target = $region86
              $region85: #{tpu_custom_call.1} parent=63 // pred_region
                %s716 = sshrl.u32 %s654, 1
                // While loop
                $region87: #{tpu_custom_call.1} parent=85 // loop_pre_header
                  _
                $region88: #{tpu_custom_call.1} parent=85 // loop_header
                  %s718 = sphi 0, %s720
                  %p719 = scmp.ge.s32.totalorder %s718, %s716
                  %s723 = sphi 0, %s732
                  %s724 = sphi %s647, %s735
                  %s725 = sphi %s658, %s736
                $region89: #{tpu_custom_call.1} parent=85 // loop_header_branch
                  %722 = sbr.rel (%p719) target = $region93
                $region90: #{tpu_custom_call.1} parent=85 // loop_body
                  %v726 = vld [vmem:[%s724] sm:$0xff]
                  %727 = vst [vmem:[%s725] sm:$0xff] %v726
                  %v728 = vld [vmem:[%s724 + $0x8] sm:$0xff]
                  %729 = vst [vmem:[%s725 + $0x8] sm:$0xff] %v728
                  %s730 = sadd.s32 1, %s723
                  %p731 = scmp.ge.s32.totalorder %s730, %s716
                  %s732 = scalar_select %p731, 0, %s730
                  %s733 = smul.u32 %s732, 16
                  %s734 = smul.u32 %s732, 16
                  %s735 = scalar_lea.vmem %s647, %s733 [#allocation7]
                  %s736 = scalar_lea.vmem %s658, %s734
                $region91: #{tpu_custom_call.1} parent=85 // loop_footer
                  %s720 = sadd.s32 %s718, 1
                $region92: #{tpu_custom_call.1} parent=85 // loop_footer_branch
                  %717 = sbr.rel target = $region88
                $region93: #{tpu_custom_call.1} parent=85 // loop_exit
                  _
                %s737 = sshrl.u32 %s654, 1
                %s738 = sand.u32 %s654, 1
                %s739 = smul.u32 %s737, 2
                %s740 = smul.u32 8, %s739
                %s741 = scalar_lea.vmem %s647, %s740 [#allocation7]
                %s742 = smul.u32 8, %s739
                %s743 = scalar_lea.vmem %s658, %s742
                // While loop
                $region94: #{tpu_custom_call.1} parent=85 // loop_pre_header
                  _
                $region95: #{tpu_custom_call.1} parent=85 // loop_header
                  %s745 = sphi 0, %s747
                  %p746 = scmp.ge.s32.totalorder %s745, %s738
                  %s750 = sphi 0, %s757
                  %s751 = sphi %s741, %s760
                  %s752 = sphi %s743, %s761
                $region96: #{tpu_custom_call.1} parent=85 // loop_header_branch
                  %749 = sbr.rel (%p746) target = $region100
                $region97: #{tpu_custom_call.1} parent=85 // loop_body
                  %v753 = vld [vmem:[%s751] sm:$0xff]
                  %754 = vst [vmem:[%s752] sm:$0xff] %v753
                  %s755 = sadd.s32 1, %s750
                  %p756 = scmp.ge.s32.totalorder %s755, %s738
                  %s757 = scalar_select %p756, 0, %s755
                  %s758 = smul.u32 %s757, 8
                  %s759 = smul.u32 %s757, 8
                  %s760 = scalar_lea.vmem %s741, %s758 [#allocation7]
                  %s761 = scalar_lea.vmem %s743, %s759
                $region98: #{tpu_custom_call.1} parent=85 // loop_footer
                  %s747 = sadd.s32 %s745, 1
                $region99: #{tpu_custom_call.1} parent=85 // loop_footer_branch
                  %744 = sbr.rel target = $region95
                $region100: #{tpu_custom_call.1} parent=85 // loop_exit
                  _
              $region86: #{tpu_custom_call.1} parent=63 // pred_fallthru
                _
              // Predicated region
              $region101: #{tpu_custom_call.1} parent=63 // pred_check
                _
              $region102: #{tpu_custom_call.1} parent=63 // pred_check_branch
                %763 = sbr.rel target = $region104
              $region103: #{tpu_custom_call.1} parent=63 // pred_region
                _
              $region104: #{tpu_custom_call.1} parent=63 // pred_fallthru
                _
            $region64: #{tpu_custom_call.1} parent=59 // pred_fallthru
              _
            // Predicated region
            $region65: #{tpu_custom_call.1} parent=59 // pred_check
              _
            $region66: #{tpu_custom_call.1} parent=59 // pred_check_branch
              %665 = sbr.rel target = $region68
            $region67: #{tpu_custom_call.1} parent=59 // pred_region
              %s667 = ssub.s32 256, 1
              %s668 = sshrl.u32 %s654, 1
              // While loop
              $region69: #{tpu_custom_call.1} parent=67 // loop_pre_header
                _
              $region70: #{tpu_custom_call.1} parent=67 // loop_header
                %s670 = sphi 0, %s672
                %p671 = scmp.ge.s32.totalorder %s670, %s668
                %s675 = sphi 0, %s684
                %s676 = sphi %s647, %s687
                %s677 = sphi %s658, %s688
              $region71: #{tpu_custom_call.1} parent=67 // loop_header_branch
                %674 = sbr.rel (%p671) target = $region75
              $region72: #{tpu_custom_call.1} parent=67 // loop_body
                %v678 = vld [vmem:[%s676] sm:%s667]
                %679 = vst [vmem:[%s677] sm:%s667] %v678
                %v680 = vld [vmem:[%s676 + $0x8] sm:%s667]
                %681 = vst [vmem:[%s677 + $0x8] sm:%s667] %v680
                %s682 = sadd.s32 1, %s675
                %p683 = scmp.ge.s32.totalorder %s682, %s668
                %s684 = scalar_select %p683, 0, %s682
                %s685 = smul.u32 %s684, 16
                %s686 = smul.u32 %s684, 16
                %s687 = scalar_lea.vmem %s647, %s685 [#allocation7]
                %s688 = scalar_lea.vmem %s658, %s686
              $region73: #{tpu_custom_call.1} parent=67 // loop_footer
                %s672 = sadd.s32 %s670, 1
              $region74: #{tpu_custom_call.1} parent=67 // loop_footer_branch
                %669 = sbr.rel target = $region70
              $region75: #{tpu_custom_call.1} parent=67 // loop_exit
                _
              %s689 = sshrl.u32 %s654, 1
              %s690 = sand.u32 %s654, 1
              %s691 = smul.u32 %s689, 2
              %s692 = smul.u32 8, %s691
              %s693 = scalar_lea.vmem %s647, %s692 [#allocation7]
              %s694 = smul.u32 8, %s691
              %s695 = scalar_lea.vmem %s658, %s694
              // While loop
              $region76: #{tpu_custom_call.1} parent=67 // loop_pre_header
                _
              $region77: #{tpu_custom_call.1} parent=67 // loop_header
                %s697 = sphi 0, %s699
                %p698 = scmp.ge.s32.totalorder %s697, %s690
                %s702 = sphi 0, %s709
                %s703 = sphi %s693, %s712
                %s704 = sphi %s695, %s713
              $region78: #{tpu_custom_call.1} parent=67 // loop_header_branch
                %701 = sbr.rel (%p698) target = $region82
              $region79: #{tpu_custom_call.1} parent=67 // loop_body
                %v705 = vld [vmem:[%s703] sm:%s667]
                %706 = vst [vmem:[%s704] sm:%s667] %v705
                %s707 = sadd.s32 1, %s702
                %p708 = scmp.ge.s32.totalorder %s707, %s690
                %s709 = scalar_select %p708, 0, %s707
                %s710 = smul.u32 %s709, 8
                %s711 = smul.u32 %s709, 8
                %s712 = scalar_lea.vmem %s693, %s710 [#allocation7]
                %s713 = scalar_lea.vmem %s695, %s711
              $region80: #{tpu_custom_call.1} parent=67 // loop_footer
                %s699 = sadd.s32 %s697, 1
              $region81: #{tpu_custom_call.1} parent=67 // loop_footer_branch
                %696 = sbr.rel target = $region77
              $region82: #{tpu_custom_call.1} parent=67 // loop_exit
                _
            $region68: #{tpu_custom_call.1} parent=59 // pred_fallthru
              _
          $region60: #{tpu_custom_call.1} parent=55 // pred_fallthru
            _
          %764 = vnop
        $region56: #{tpu_custom_call.1} parent=39 // pred_fallthru
          _
      $region40: #{tpu_custom_call.1} parent=5 // pred_fallthru
        _
      %p765 = scmp.le.s32.totalorder 2, %s15
      // Predicated region
      $region105: #{tpu_custom_call.1} parent=5 // pred_check
        %p766 = pneg %p765
      $region106: #{tpu_custom_call.1} parent=5 // pred_check_branch
        %768 = sbr.rel (%p766) target = $region108
      $region107: #{tpu_custom_call.1} parent=5 // pred_region
        %s769 = ssub.s32 %s15, 2
        // Predicated region
        $region109: #{tpu_custom_call.1} parent=107 // pred_check
          %p770 = pneg %p154
        $region110: #{tpu_custom_call.1} parent=107 // pred_check_branch
          %772 = sbr.rel (%p770) target = $region112
        $region111: #{tpu_custom_call.1} parent=107 // pred_region
          %s773 = sand.u32 %s139, 1
          %s774 = sand.u32 %s139, 1
          %s775 = smul.addr %s774, 16
          %s776 = scalar_lea.vmem [#allocation7], %s775
        $region112: #{tpu_custom_call.1} parent=107 // pred_fallthru
          _
      $region108: #{tpu_custom_call.1} parent=5 // pred_fallthru
        _
    $region6: #{tpu_custom_call.1} parent=1 // loop_footer
      %s19 = sadd.s32 1, %s15
    $region7: #{tpu_custom_call.1} parent=1 // loop_footer_branch
      %14 = sbr.rel target = $region3
    $region8: #{tpu_custom_call.1} parent=1 // loop_exit
      _
    %777 = vsyncpa [#allocation3], 1
    %s778 = scalar_lea.sflag [#allocation3], 1
    %779 = vsyncpa %s778, 1
    %780 = vsyncpa [#allocation5], 1

</llo_original>
